<compile_context>
chip_gen: v7x
topology: tpu7x:2x2x1
jax: 0.10.0
libtpu: 0.0.40
codegen_flags: <defaults>
</compile_context>

<pallas_src>
import functools

import jax
import jax.numpy as jnp
import numpy as np
from jax import lax
from jax.experimental import pallas as pl
from jax.experimental.pallas import tpu as pltpu

_LANES = 128
_TARGET_BLOCK_BYTES = 2 * 1024 * 1024   # ~2 MiB per input block (review: 2-8 MiB sweet spot)
_MAX_BLOCK_ROWS = 16384                 # row cap; the byte cap above usually governs
_MXU_MIN_ROWS = 64                      # below this the VPU row-sum is cheaper/safer
_VMEM_LIMIT_BYTES = 32 * 1024 * 1024    # explicit scope: > v5e default (16 MiB), <= v7x physical


def _cdiv(a, b):
    return (a + b - 1) // b


def _round_up(x, m):
    return ((x + m - 1) // m) * m


def _metrics_kernel(pred_ref, label_ref, out_ref, *, ignore_index, total_rows,
                    block_rows, ragged, use_mxu):
    """Masked compares + per-lane column counts, accumulated across the grid.

    out_ref: (4, 128) int32 resident accumulator (per-lane partial counts).
      row 0 = correct (pred == label & valid)
      row 1 = valid   (label != ignore_index)
      row 2 = fp      (pred > 0 & label == 0 & valid)
      row 3 = fn      (pred == 0 & label > 0 & valid)
    """
    @pl.when(pl.program_id(0) == 0)
    def _init():
        out_ref[...] = jnp.zeros((4, _LANES), jnp.int32)

    pred = pred_ref[...]
    label = label_ref[...]

    if ragged:
        # Only the last grid block can run past the real rows; those VMEM rows hold
        # unspecified data, so neutralize them by forcing label -> ignore_index.
        row0 = pl.program_id(0) * block_rows
        gid = lax.broadcasted_iota(jnp.int32, label.shape, 0) + row0
        label = jnp.where(gid < total_rows, label,
                          jnp.array(ignore_index, dtype=label.dtype))

    valid = label != ignore_index
    correct = valid & (pred == label)
    if ignore_index < 0:
        # label == 0 / label > 0 already exclude ignore_index (< 0): skip `& valid`.
        fp = (pred > 0) & (label == 0)
        fn = (pred == 0) & (label > 0)
    else:
        fp = valid & (pred > 0) & (label == 0)
        fn = valid & (pred == 0) & (label > 0)

    if use_mxu:
        # Column sums on the MXU (ones-vector contraction) keep the VALU slots free so
        # the kernel stays HBM-bound. bf16 0/1 operands with f32 accumulation are exact
        # (per-block column sums <= block_rows << 2^24).
        ones = jnp.ones((1, block_rows), jnp.bfloat16)

        def colsum(mask):
            return lax.dot_general(
                ones, mask.astype(jnp.bfloat16),
                dimension_numbers=(((1,), (0,)), ((), ())),
                preferred_element_type=jnp.float32,
            ).astype(jnp.int32)                      # (1, 128)
    else:
        def colsum(mask):
            return jnp.sum(mask, axis=0, keepdims=True, dtype=jnp.int32)   # (1, 128)

    for i, mask in enumerate((correct, valid, fp, fn)):
        row = out_ref[pl.ds(i, 1), :]
        out_ref[pl.ds(i, 1), :] = row + colsum(mask)


@functools.partial(jax.jit, static_argnames=("ignore_index", "max_block_rows"))
def _token_metric_sums(pred, label, *, ignore_index, max_block_rows=_MAX_BLOCK_ROWS):
    """Single fused streaming pass. Returns int32 (4,) = [correct, valid, fp, fn]."""
    pred = jnp.asarray(pred)
    label = jnp.asarray(label)

    # Keep the caller's integer dtype (no narrowing copies). Upcast to int32 only when
    # needed (non-integer inputs, >32-bit ints, or ignore_index not representable).
    cdt = jnp.promote_types(pred.dtype, label.dtype)
    if not jnp.issubdtype(cdt, jnp.integer):
        cdt = jnp.int32
    else:
        info = jnp.iinfo(cdt)
        if info.bits > 32 or not (info.min <= ignore_index <= info.max):
            cdt = jnp.int32
    pred = pred.astype(cdt)      # no-op when already cdt
    label = label.astype(cdt)

    pred = pred.reshape(-1)
    label = label.reshape(-1)
    n = pred.shape[0]
    if n == 0:
        return jnp.zeros((4,), jnp.int32)

    if n % _LANES != 0:
        # TODO(synk): token counts that are not a multiple of 128 take a one-off pad copy
        # here (lane-aligned callers hit the zero-copy bitcast-reshape path below).
        n_pad = _round_up(n, _LANES)
        pred = jnp.pad(pred, (0, n_pad - n))                              # padded preds = 0
        label = jnp.pad(label, (0, n_pad - n), constant_values=ignore_index)
        n = n_pad

    rows = n // _LANES
    pred2 = pred.reshape(rows, _LANES)      # free bitcast reshape (row-major contiguous)
    label2 = label.reshape(rows, _LANES)

    # Block sizing: cap by bytes (~2 MiB per input block), aligned to the dtype's native
    # sublane tile, double-buffered by the default pipeline.
    itemsize = jnp.dtype(cdt).itemsize
    row_align = max(8, 32 // itemsize)
    bytes_cap = max(row_align, _TARGET_BLOCK_BYTES // (_LANES * itemsize))
    cap = min(int(max_block_rows), bytes_cap)
    cap = max(row_align, (cap // row_align) * row_align)

    if rows <= cap:
        block_rows, grid = rows, 1
    else:
        block_rows, grid = cap, _cdiv(rows, cap)
    ragged = (rows % block_rows) != 0

    kernel = functools.partial(
        _metrics_kernel,
        ignore_index=int(ignore_index),
        total_rows=rows,
        block_rows=block_rows,
        ragged=ragged,
        use_mxu=block_rows >= _MXU_MIN_ROWS,
    )

    in_spec = pl.BlockSpec((block_rows, _LANES), lambda i: (i, 0))
    out = pl.pallas_call(
        kernel,
        out_shape=jax.ShapeDtypeStruct((4, _LANES), jnp.int32),
        grid_spec=pl.GridSpec(
            grid=(grid,),
            in_specs=[in_spec, in_spec],
            out_specs=pl.BlockSpec((4, _LANES), lambda i: (0, 0)),   # resident accumulator
        ),
        compiler_params=pltpu.CompilerParams(
            dimension_semantics=("arbitrary",),
            vmem_limit_bytes=_VMEM_LIMIT_BYTES,
        ),
    )(pred2, label2)

    # Tiny (4,128)->(4,) reduction; fuses with the caller's float math.
    return jnp.sum(out, axis=1)


class FewShotNERModelPallas:
    """JAX/Pallas port of the tensor math in FewShotNERModel."""

    def __init__(self, ignore_index=-1):
        self.ignore_index = int(ignore_index)

    def _sums(self, pred, label, max_block_rows=_MAX_BLOCK_ROWS):
        return _token_metric_sums(
            pred, label,
            ignore_index=self.ignore_index,
            max_block_rows=int(max_block_rows),
        )

    def token_metrics(self, pred, label, max_block_rows=_MAX_BLOCK_ROWS):
        """Single kernel pass -> (accuracy, fp, fn, n_valid_tokens)."""
        s = self._sums(pred, label, max_block_rows)
        # NOTE: if no valid tokens exist this is nan, mirroring torch.mean over an empty
        # selection in the reference module.
        acc = s[0].astype(jnp.float32) / s[1].astype(jnp.float32)
        return acc, s[2].astype(jnp.float32), s[3].astype(jnp.float32), s[1]

    def accuracy(self, pred, label):
        """mean(pred == label) over tokens with label != ignore_index."""
        s = self._sums(pred, label)
        return s[0].astype(jnp.float32) / s[1].astype(jnp.float32)

    def error_analysis_token_counts(self, pred, label):
        """Token-level (fp, fn, num_valid_tokens) — the numeric part of error_analysis."""
        s = self._sums(pred, label)
        return s[2].astype(jnp.float32), s[3].astype(jnp.float32), s[1]

    def forward(self, input_ids, tagging_labels, target_class, labels):
        # TODO(synk): forward() is NotImplementedError in the reference module; there is
        # no encoder compute defined to port.
        raise NotImplementedError

    # TODO(synk): metrics_by_entity / error_analysis span & dict bookkeeping
    # (__get_class_span_dict__, label2tag string mapping, entity intersections) is pure
    # Python control flow over dicts/strings with data-dependent loops — no Pallas
    # equivalent.


def _make_case(key, shape, dtype=jnp.int32, n_classes=4, ignore_frac=0.25):
    k1, k2, k3 = jax.random.split(key, 3)
    pred = jax.random.randint(k1, shape, 0, n_classes, dtype=jnp.int32).astype(dtype)
    label = jax.random.randint(k2, shape, 0, n_classes, dtype=jnp.int32).astype(dtype)
    mask = jax.random.bernoulli(k3, ignore_frac, shape)
    label = jnp.where(mask, jnp.array(-1, dtype), label)
    return pred, label


if __name__ == "__main__":
    key = jax.random.PRNGKey(0)
    model = FewShotNERModelPallas(ignore_index=-1)

    # (shape, dtype, max_block_rows override) — small shapes that exercise every code
    # path: pad fallback, zero-copy aligned path, multi-block ragged VPU-sum path,
    # multi-block ragged MXU-dot path, and int8 inputs.
    cases = [
        ((2, 8), jnp.int32, None),      # batch=2, seq=8 -> pad fallback, single tiny block
        ((2, 64), jnp.int32, None),     # 128 tokens -> zero-copy path, single block
        ((4, 352), jnp.int32, 8),       # 11 rows, cap 8 -> multi-block, ragged, VPU sum
        ((65, 128), jnp.int32, 64),     # 65 rows, cap 64 -> multi-block, ragged, MXU path
        ((3, 128), jnp.int8, None),     # caller-provided int8 stays int8
    ]

    keys = jax.random.split(key, len(cases))
    for (shape, dtype, cap), k in zip(cases, keys):
        pred, label = _make_case(k, shape, dtype=dtype)
        if cap is None:
            acc, fp, fn, n_valid = model.token_metrics(pred, label)
        else:
            acc, fp, fn, n_valid = model.token_metrics(pred, label, max_block_rows=cap)
        jax.block_until_ready((acc, fp, fn, n_valid))

        # Pure-numpy reference (same semantics as the PyTorch methods).
        p = np.asarray(pred).reshape(-1).astype(np.int64)
        l = np.asarray(label).reshape(-1).astype(np.int64)
        keep = l != -1
        pk, lk = p[keep], l[keep]
        ref_acc = float(np.mean((pk == lk).astype(np.float32)))
        ref_fp = float(np.sum((pk > 0) & (lk == 0)))
        ref_fn = float(np.sum((pk == 0) & (lk > 0)))
        ref_n = float(pk.shape[0])

        assert np.isclose(float(acc), ref_acc, atol=1e-6), (shape, float(acc), ref_acc)
        assert float(fp) == ref_fp, (shape, float(fp), ref_fp)
        assert float(fn) == ref_fn, (shape, float(fn), ref_fn)
        assert float(n_valid) == ref_n, (shape, float(n_valid), ref_n)

    print("KERNEL_OK")
</pallas_src>

<mosaic_0001>
module attributes {stable_mosaic.version = 11 : i64} {
  func.func @_metrics_kernel(%arg0: i32, %arg1: memref<1x128xi32, #tpu.memory_space<vmem>>, %arg2: memref<1x128xi32, #tpu.memory_space<vmem>>, %arg3: memref<4x128xi32, #tpu.memory_space<vmem>>) attributes {dimension_semantics = [#tpu.dimension_semantics<arbitrary>], iteration_bounds = array<i64: 1>, scalar_prefetch = 0 : i64, scratch_operands = 0 : i64, tpu.core_type = #tpu.core_type<tc>, window_params = [{transform_indices = @transform_0, window_bounds = array<i64: 1, 128>}, {transform_indices = @transform_1, window_bounds = array<i64: 1, 128>}, {pipeline_mode = #tpu.pipeline_mode<synchronous>, transform_indices = @transform_2, window_bounds = array<i64: 4, 128>}]} {
    %c0_i32 = arith.constant 0 : i32
    %0 = arith.cmpi eq, %arg0, %c0_i32 : i32
    %1 = arith.extui %0 : i1 to i32
    %c0_i32_0 = arith.constant 0 : i32
    %2 = arith.cmpi ne, %1, %c0_i32_0 : i32
    scf.if %2 {
      %c0_i32_24 = arith.constant 0 : i32
      %43 = vector.broadcast %c0_i32_24 : i32 to vector<4x128xi32>
      %c0_25 = arith.constant 0 : index
      %c0_26 = arith.constant 0 : index
      %44 = vector.load %arg3[%c0_25, %c0_26] : memref<4x128xi32, #tpu.memory_space<vmem>>, vector<4x128xi32>
      tpu.vector_store %arg3[%c0_25, %c0_26], %43 {strides = array<i32>} : memref<4x128xi32, #tpu.memory_space<vmem>>, vector<4x128xi32>,
    } else {
    }
    %c0 = arith.constant 0 : index
    %c0_1 = arith.constant 0 : index
    %3 = vector.load %arg1[%c0, %c0_1] : memref<1x128xi32, #tpu.memory_space<vmem>>, vector<1x128xi32>
    %c0_2 = arith.constant 0 : index
    %c0_3 = arith.constant 0 : index
    %4 = vector.load %arg2[%c0_2, %c0_3] : memref<1x128xi32, #tpu.memory_space<vmem>>, vector<1x128xi32>
    %c-1_i32 = arith.constant -1 : i32
    %5 = vector.broadcast %c-1_i32 : i32 to vector<1x128xi32>
    %6 = arith.cmpi ne, %4, %5 : vector<1x128xi32>
    %7 = arith.cmpi eq, %3, %4 : vector<1x128xi32>
    %8 = arith.andi %6, %7 : vector<1x128xi1>
    %c0_i32_4 = arith.constant 0 : i32
    %9 = vector.broadcast %c0_i32_4 : i32 to vector<1x128xi32>
    %10 = arith.cmpi sgt, %3, %9 : vector<1x128xi32>
    %c0_i32_5 = arith.constant 0 : i32
    %11 = vector.broadcast %c0_i32_5 : i32 to vector<1x128xi32>
    %12 = arith.cmpi eq, %4, %11 : vector<1x128xi32>
    %13 = arith.andi %10, %12 : vector<1x128xi1>
    %c0_i32_6 = arith.constant 0 : i32
    %14 = vector.broadcast %c0_i32_6 : i32 to vector<1x128xi32>
    %15 = arith.cmpi eq, %3, %14 : vector<1x128xi32>
    %c0_i32_7 = arith.constant 0 : i32
    %16 = vector.broadcast %c0_i32_7 : i32 to vector<1x128xi32>
    %17 = arith.cmpi sgt, %4, %16 : vector<1x128xi32>
    %18 = arith.andi %15, %17 : vector<1x128xi1>
    %c0_8 = arith.constant 0 : index
    %c0_9 = arith.constant 0 : index
    %19 = vector.load %arg3[%c0_8, %c0_9] : memref<4x128xi32, #tpu.memory_space<vmem>>, vector<1x128xi32>
    %20 = arith.extui %8 : vector<1x128xi1> to vector<1x128xi32>
    %cst = arith.constant dense<0> : vector<128xi32>
    %21 = vector.multi_reduction <add>, %20, %cst [0] : vector<1x128xi32> to vector<128xi32>
    %22 = vector.shape_cast %21 : vector<128xi32> to vector<1x128xi32>
    %23 = arith.addi %19, %22 : vector<1x128xi32>
    %c0_10 = arith.constant 0 : index
    %c0_11 = arith.constant 0 : index
    %24 = vector.load %arg3[%c0_10, %c0_11] : memref<4x128xi32, #tpu.memory_space<vmem>>, vector<1x128xi32>
    tpu.vector_store %arg3[%c0_10, %c0_11], %23 {strides = array<i32>} : memref<4x128xi32, #tpu.memory_space<vmem>>, vector<1x128xi32>,
    %c1 = arith.constant 1 : index
    %c0_12 = arith.constant 0 : index
    %25 = vector.load %arg3[%c1, %c0_12] : memref<4x128xi32, #tpu.memory_space<vmem>>, vector<1x128xi32>
    %26 = arith.extui %6 : vector<1x128xi1> to vector<1x128xi32>
    %cst_13 = arith.constant dense<0> : vector<128xi32>
    %27 = vector.multi_reduction <add>, %26, %cst_13 [0] : vector<1x128xi32> to vector<128xi32>
    %28 = vector.shape_cast %27 : vector<128xi32> to vector<1x128xi32>
    %29 = arith.addi %25, %28 : vector<1x128xi32>
    %c1_14 = arith.constant 1 : index
    %c0_15 = arith.constant 0 : index
    %30 = vector.load %arg3[%c1_14, %c0_15] : memref<4x128xi32, #tpu.memory_space<vmem>>, vector<1x128xi32>
    tpu.vector_store %arg3[%c1_14, %c0_15], %29 {strides = array<i32>} : memref<4x128xi32, #tpu.memory_space<vmem>>, vector<1x128xi32>,
    %c2 = arith.constant 2 : index
    %c0_16 = arith.constant 0 : index
    %31 = vector.load %arg3[%c2, %c0_16] : memref<4x128xi32, #tpu.memory_space<vmem>>, vector<1x128xi32>
    %32 = arith.extui %13 : vector<1x128xi1> to vector<1x128xi32>
    %cst_17 = arith.constant dense<0> : vector<128xi32>
    %33 = vector.multi_reduction <add>, %32, %cst_17 [0] : vector<1x128xi32> to vector<128xi32>
    %34 = vector.shape_cast %33 : vector<128xi32> to vector<1x128xi32>
    %35 = arith.addi %31, %34 : vector<1x128xi32>
    %c2_18 = arith.constant 2 : index
    %c0_19 = arith.constant 0 : index
    %36 = vector.load %arg3[%c2_18, %c0_19] : memref<4x128xi32, #tpu.memory_space<vmem>>, vector<1x128xi32>
    tpu.vector_store %arg3[%c2_18, %c0_19], %35 {strides = array<i32>} : memref<4x128xi32, #tpu.memory_space<vmem>>, vector<1x128xi32>,
    %c3 = arith.constant 3 : index
    %c0_20 = arith.constant 0 : index
    %37 = vector.load %arg3[%c3, %c0_20] : memref<4x128xi32, #tpu.memory_space<vmem>>, vector<1x128xi32>
    %38 = arith.extui %18 : vector<1x128xi1> to vector<1x128xi32>
    %cst_21 = arith.constant dense<0> : vector<128xi32>
    %39 = vector.multi_reduction <add>, %38, %cst_21 [0] : vector<1x128xi32> to vector<128xi32>
    %40 = vector.shape_cast %39 : vector<128xi32> to vector<1x128xi32>
    %41 = arith.addi %37, %40 : vector<1x128xi32>
    %c3_22 = arith.constant 3 : index
    %c0_23 = arith.constant 0 : index
    %42 = vector.load %arg3[%c3_22, %c0_23] : memref<4x128xi32, #tpu.memory_space<vmem>>, vector<1x128xi32>
    tpu.vector_store %arg3[%c3_22, %c0_23], %41 {strides = array<i32>} : memref<4x128xi32, #tpu.memory_space<vmem>>, vector<1x128xi32>,
    return
  }
  func.func @transform_0(%arg0: i32) -> (i32, i32) {
    %c0_i32 = arith.constant 0 : i32
    %c0_i32_0 = arith.constant 0 : i32
    return %arg0, %c0_i32 : i32, i32
  }
  func.func @transform_1(%arg0: i32) -> (i32, i32) {
    %c0_i32 = arith.constant 0 : i32
    %c0_i32_0 = arith.constant 0 : i32
    return %arg0, %c0_i32 : i32, i32
  }
  func.func @transform_2(%arg0: i32) -> (i32, i32) {
    %c0_i32 = arith.constant 0 : i32
    %c0_i32_0 = arith.constant 0 : i32
    %c0_i32_1 = arith.constant 0 : i32
    return %c0_i32, %c0_i32_0 : i32, i32
  }
}

</mosaic_0001>

<llo_original>
// kernel: _token_metric_sums.1
$region0: #{_token_metric_sums.1}
  #allocation0 [shape = 'u32[]', space=smem, size = 0x4, offset = 0x4, fixed_abs, tag = 'smem constant byte address 0x4 - core index']
  #allocation1 [shape = 'u32[144,128]{1,0:T(1,128)}', space=vmem, size = 0x12000, scoped, tag = 'internal scratch']
  %s0 = inlined_call_operand.vmem [shape: s32[1,128], index: 0, kind: input, shape index: {}]
  %s1 = inlined_call_operand.vmem [shape: s32[1,128], index: 1, kind: input, shape index: {}]
  %s2 = inlined_call_operand.vmem [shape: s32[4,128], index: 2, kind: output, shape index: {}]
  %s3 = sld [smem:[#allocation0]]
  $region22: #{_token_metric_sums.1} parent=0
    _
  %s5 = ssub.s32 1, %s3
  %s6 = scalar_select 0, %s5, %s3
  // Predicated region
  $region2: #{_token_metric_sums.1} parent=0 // pred_check
    _
  $region3: #{_token_metric_sums.1} parent=0 // pred_check_branch
    %8 = sbr.rel (0) target = $region5
  $region4: #{_token_metric_sums.1} parent=0 // pred_region
    _
  $region5: #{_token_metric_sums.1} parent=0 // pred_fallthru
    _
  // Predicated region
  $region6: #{_token_metric_sums.1} parent=0 // pred_check
    _
  $region7: #{_token_metric_sums.1} parent=0 // pred_check_branch
    %10 = sbr.rel (0) target = $region9
  $region8: #{_token_metric_sums.1} parent=0 // pred_region
    _
  $region9: #{_token_metric_sums.1} parent=0 // pred_fallthru
    _
  %p11 = scmp.eq.s32.totalorder 0, 0
  // Predicated region
  $region10: #{_token_metric_sums.1} parent=0 // pred_check
    %p12 = pneg %p11
  $region11: #{_token_metric_sums.1} parent=0 // pred_check_branch
    %14 = sbr.rel (%p12) target = $region13
  $region12: #{_token_metric_sums.1} parent=0 // pred_region
    %15 = vst [vmem:[%s2] sm:$0xf] 0
  $region13: #{_token_metric_sums.1} parent=0 // pred_fallthru
    _
  %v16 = vld [vmem:[%s0] sm:$0x1]
  %v17 = vld [vmem:[%s1] sm:$0x1]
  %vm18 = vcmp.ne.s32.totalorder %v17, 4294967295
  %vm19 = vcmp.eq.s32.totalorder %v16, %v17
  %vm20 = vmand %vm18, %vm19
  %vm21 = vcmp.gt.s32.totalorder %v16, 0
  %vm22 = vcmp.eq.s32.totalorder %v17, 0
  %vm23 = vmand %vm21, %vm22
  %vm24 = vcmp.eq.s32.totalorder %v16, 0
  %vm25 = vcmp.gt.s32.totalorder %v17, 0
  %vm26 = vmand %vm24, %vm25
  %v27 = vld [vmem:[%s2] sm:$0x1]
  %v28 = vsel %vm20, 1, 0
  %v29 = vadd.s32 %v27, %v28
  %30 = vst [vmem:[%s2] sm:$0x1] %v29
  %v31 = vld [vmem:[%s2 + $0x1] sm:$0x1]
  %v32 = vsel %vm18, 1, 0
  %v33 = vadd.s32 %v31, %v32
  %34 = vst [vmem:[%s2 + $0x1] sm:$0x1] %v33
  %v35 = vld [vmem:[%s2 + $0x2] sm:$0x1]
  %v36 = vsel %vm23, 1, 0
  %v37 = vadd.s32 %v35, %v36
  %38 = vst [vmem:[%s2 + $0x2] sm:$0x1] %v37
  %v39 = vld [vmem:[%s2 + $0x3] sm:$0x1]
  %v40 = vsel %vm26, 1, 0
  %v41 = vadd.s32 %v39, %v40
  %42 = vst [vmem:[%s2 + $0x3] sm:$0x1] %v41
  // Predicated region
  $region14: #{_token_metric_sums.1} parent=0 // pred_check
    _
  $region15: #{_token_metric_sums.1} parent=0 // pred_check_branch
    %44 = sbr.rel (0) target = $region17
  $region16: #{_token_metric_sums.1} parent=0 // pred_region
    _
  $region17: #{_token_metric_sums.1} parent=0 // pred_fallthru
    _
  // Predicated region
  $region18: #{_token_metric_sums.1} parent=0 // pred_check
    _
  $region19: #{_token_metric_sums.1} parent=0 // pred_check_branch
    %46 = sbr.rel (0) target = $region21
  $region20: #{_token_metric_sums.1} parent=0 // pred_region
    _
  $region21: #{_token_metric_sums.1} parent=0 // pred_fallthru
    _

</llo_original>
